<compile_context>
chip_gen: v7x
topology: tpu7x:2x2x1
jax: 0.10.0
libtpu: 0.0.40
codegen_flags: <defaults>
</compile_context>

<pallas_src>
import math

import jax
import jax.numpy as jnp
from jax.experimental import pallas as pl
from jax.experimental.pallas import tpu as pltpu


# -----------------------------------------------------------------------------
# Pallas kernel: one lane-dense (TN, D) x (D, P*D) MXU matmul per grid step.
# -----------------------------------------------------------------------------
def _stiefel_project_kernel(a_ref, x_ref, o_ref):
    # a_ref: (D, P*D)   concatenated, pre-transposed rotations (VMEM-resident)
    # x_ref: (TN, D)    current tile of input activations
    # o_ref: (TN, P*D)  current tile of the fused output
    o_ref[...] = jnp.dot(
        x_ref[...], a_ref[...], preferred_element_type=jnp.float32
    ).astype(o_ref.dtype)


def _pick_batch_tile(N: int, D: int, PD: int, dtype_bytes: int, tn_cap: int = 1024) -> int:
    """8-aligned batch tile that keeps double-buffered tiles + resident A_cat small."""
    if N <= tn_cap:
        return N  # single grid step; full-array block shapes are always legal
    tn = tn_cap
    # VMEM budget (conservative): 2*x_tile + 2*out_tile + A_cat  <=  ~24 MiB
    budget = 24 * 1024 * 1024
    a_bytes = D * PD * dtype_bytes
    while tn > 8:
        tiles = 2 * tn * D * dtype_bytes + 2 * tn * PD * dtype_bytes
        if tiles + a_bytes <= budget:
            break
        tn //= 2
    return max(8, (tn // 8) * 8)


def smooth_stiefel_project(A: jax.Array, x: jax.Array, *, tn_cap: int = 1024) -> jax.Array:
    """A: (P, D, D), x: (N, D) -> (P, N, D) equivalent to einsum('pdi,ni->pnd')."""
    P, D, _ = A.shape
    N, _ = x.shape
    PD = P * D

    # A_cat[i, p*D + d] = A[p, d, i]   (one-time wrapper-side layout change).
    A_cat = jnp.transpose(A, (2, 0, 1)).reshape(D, PD)

    tn = _pick_batch_tile(N, D, PD, jnp.dtype(x.dtype).itemsize, tn_cap)
    grid = (pl.cdiv(N, tn),)

    cost = pl.CostEstimate(
        flops=2 * N * D * PD,
        transcendentals=0,
        bytes_accessed=(N * D + D * PD + N * PD) * jnp.dtype(x.dtype).itemsize,
    )

    y = pl.pallas_call(
        _stiefel_project_kernel,
        out_shape=jax.ShapeDtypeStruct((N, PD), x.dtype),
        grid_spec=pltpu.PrefetchScalarGridSpec(
            num_scalar_prefetch=0,
            grid=grid,
            in_specs=[
                # A_cat: same block every step -> stays resident in VMEM.
                pl.BlockSpec((D, PD), lambda n: (0, 0)),
                # x: tiled along the batch axis, pipelined/double-buffered.
                pl.BlockSpec((tn, D), lambda n: (n, 0)),
            ],
            out_specs=pl.BlockSpec((tn, PD), lambda n: (n, 0)),
        ),
        compiler_params=pltpu.CompilerParams(
            # N-tile axis is independent -> shard across TensorCores on v7x.
            dimension_semantics=("parallel",),
        ),
        cost_estimate=cost,
    )(A_cat, x)

    # (N, P*D) -> (N, P, D) -> (P, N, D); layout plumbing handled by XLA.
    return jnp.transpose(y.reshape(N, P, D), (1, 0, 2))


# -----------------------------------------------------------------------------
# Deterministic parameter construction (mirrors the PyTorch __init__).
# -----------------------------------------------------------------------------
def make_rotations(key, dim: int, petals: int, seed_angle: float = math.pi / 8):
    G = jax.random.normal(key, (dim, dim), dtype=jnp.float32)
    G = G - G.T
    norm = jnp.linalg.norm(G)                      # Frobenius norm
    G = G * (seed_angle / norm)
    ts = jnp.arange(petals, dtype=jnp.float32) / max(petals - 1, 1)
    # A_p = expm(t_p * G)  (parameter construction, done once outside the kernel)
    A = jax.vmap(lambda t: jax.scipy.linalg.expm(t * G))(ts)
    return A  # (P, D, D)


if __name__ == "__main__":
    dim = 32
    petals = 4     # petals * dim = 128 -> lane-dense output slab
    batch = 8

    key = jax.random.PRNGKey(0)
    k_gen, k_x = jax.random.split(key)

    A = make_rotations(k_gen, dim, petals)                 # (P, D, D)
    x = jax.random.normal(k_x, (batch, dim), jnp.float32)  # (N, D)

    out = smooth_stiefel_project(A, x)
    out = jax.block_until_ready(out)

    # Reference check against the einsum semantics of the PyTorch forward.
    ref = jnp.einsum("pdi,ni->pnd", A, x)
    assert out.shape == (petals, batch, dim)
    assert jnp.allclose(out, ref, atol=1e-5, rtol=1e-5)

    print("KERNEL_OK")
</pallas_src>

<mosaic_0001>
module attributes {stable_mosaic.version = 11 : i64} {
  func.func @_stiefel_project_kernel(%arg0: i32, %arg1: memref<32x128xf32, #tpu.memory_space<vmem>>, %arg2: memref<8x32xf32, #tpu.memory_space<vmem>>, %arg3: memref<8x128xf32, #tpu.memory_space<vmem>>) attributes {dimension_semantics = [#tpu.dimension_semantics<parallel>], iteration_bounds = array<i64: 1>, scalar_prefetch = 0 : i64, scratch_operands = 0 : i64, tpu.core_type = #tpu.core_type<tc>, window_params = [{pipeline_mode = #tpu.pipeline_mode<synchronous>, transform_indices = @transform_0, window_bounds = array<i64: 32, 128>}, {transform_indices = @transform_1, window_bounds = array<i64: 8, 32>}, {transform_indices = @transform_2, window_bounds = array<i64: 8, 128>}]} {
    %c0 = arith.constant 0 : index
    %c0_0 = arith.constant 0 : index
    %0 = vector.load %arg2[%c0, %c0_0] : memref<8x32xf32, #tpu.memory_space<vmem>>, vector<8x32xf32>
    %c0_1 = arith.constant 0 : index
    %c0_2 = arith.constant 0 : index
    %1 = vector.load %arg1[%c0_1, %c0_2] : memref<32x128xf32, #tpu.memory_space<vmem>>, vector<32x128xf32>
    %cst = arith.constant dense<0.000000e+00> : vector<8x128xf32>
    %2 = tpu.matmul %0, %1, %cst {dimension_numbers = #tpu.dot_dimension_numbers<[1], [0], [0], [1], [0, 0, 1, 1], [], []>} : vector<8x32xf32>, vector<32x128xf32>, vector<8x128xf32> -> vector<8x128xf32>
    %c0_3 = arith.constant 0 : index
    %c0_4 = arith.constant 0 : index
    %3 = vector.load %arg3[%c0_3, %c0_4] : memref<8x128xf32, #tpu.memory_space<vmem>>, vector<8x128xf32>
    tpu.vector_store %arg3[%c0_3, %c0_4], %2 {strides = array<i32>} : memref<8x128xf32, #tpu.memory_space<vmem>>, vector<8x128xf32>,
    return
  }
  func.func @transform_0(%arg0: i32) -> (i32, i32) {
    %c0_i32 = arith.constant 0 : i32
    %c0_i32_0 = arith.constant 0 : i32
    %c0_i32_1 = arith.constant 0 : i32
    return %c0_i32, %c0_i32_0 : i32, i32
  }
  func.func @transform_1(%arg0: i32) -> (i32, i32) {
    %c0_i32 = arith.constant 0 : i32
    %c0_i32_0 = arith.constant 0 : i32
    return %arg0, %c0_i32 : i32, i32
  }
  func.func @transform_2(%arg0: i32) -> (i32, i32) {
    %c0_i32 = arith.constant 0 : i32
    %c0_i32_0 = arith.constant 0 : i32
    return %arg0, %c0_i32 : i32, i32
  }
}

</mosaic_0001>

<llo_original>
// kernel: tpu_custom_call.1
$region0: #{tpu_custom_call.1}
  #allocation0 [shape = 'u32[]', space=smem, size = 0x4, offset = 0x4, fixed_abs, tag = 'smem constant byte address 0x4 - core index']
  #allocation1 [shape = 'u32[144,128]{1,0:T(1,128)}', space=vmem, size = 0x12000, scoped, tag = 'internal scratch']
  %s0 = inlined_call_operand.hbm [shape: f32[32,128], index: 0, kind: input, shape index: {}]
  %s1 = inlined_call_operand.hbm [shape: f32[8,32], index: 1, kind: input, shape index: {}]
  %s2 = inlined_call_operand.hbm [shape: f32[8,128], index: 2, kind: output, shape index: {}]
  %s3 = sld [smem:[#allocation0]]
  $region26: #{tpu_custom_call.1} parent=0
    _
  %s5 = ssub.s32 1, %s3
  %s6 = scalar_select 0, %s5, %s3
  $region1: #{tpu_custom_call.1} parent=0
    #allocation2 [shape = 'u8[16384]{0}', space=vmem, size = 0x4000, scoped, tag = 'input window, operand 0, single buffered']
    #allocation3 [shape = 's32[1]{0}', space=sflag, size = 0x4, scoped, tag = 'scoped memory for tpu_custom_call.1']
    #allocation4 [shape = 's32[1]{0}', space=sflag, size = 0x4, scoped, tag = 'scoped memory for tpu_custom_call.1']
    #allocation5 [shape = 'u8[4096]{0}', space=vmem, size = 0x1000, scoped, tag = 'input window, operand 1, single buffered']
    #allocation6 [shape = 's32[1]{0}', space=sflag, size = 0x4, scoped, tag = 'scoped memory for tpu_custom_call.1']
    #allocation7 [shape = 'u8[4096]{0}', space=vmem, size = 0x1000, scoped, tag = 'output window, operand 0, single buffered']
    %7 = vsyncpa [#allocation3], 0
    %8 = vsyncpa [#allocation6], 0
    %9 = vsyncpa [#allocation4], 0
    // Predicated region
    $region2: #{tpu_custom_call.1} parent=1 // pred_check
      _
    $region3: #{tpu_custom_call.1} parent=1 // pred_check_branch
      %11 = sbr.rel (0) target = $region5
    $region4: #{tpu_custom_call.1} parent=1 // pred_region
      %s13 = ssub.s32 512, 512
      %14 = vsyncadd [#allocation3], %s13
      %s15 = sshll.u32 [#allocation2], 4
      %s16 = int_to_ptr.vmem [resolvable:$true] %s15
      %21 = dma.hbm_to_vmem [thread:$0]  %s0, 512, %s16, [#allocation3], 128, 128, 8
    $region5: #{tpu_custom_call.1} parent=1 // pred_fallthru
      _
    // Predicated region
    $region6: #{tpu_custom_call.1} parent=1 // pred_check
      _
    $region7: #{tpu_custom_call.1} parent=1 // pred_check_branch
      %23 = sbr.rel (0) target = $region9
    $region8: #{tpu_custom_call.1} parent=1 // pred_region
      %s25 = ssub.s32 128, 128
      %26 = vsyncadd [#allocation6], %s25
      %s28 = sshll.u32 [#allocation5], 4
      %s29 = int_to_ptr.vmem [resolvable:$true] %s28
      %31 = dma.hbm_to_vmem [thread:$0]  %s1, 128, %s29, [#allocation6]
    $region9: #{tpu_custom_call.1} parent=1 // pred_fallthru
      _
    // Predicated region
    $region10: #{tpu_custom_call.1} parent=1 // pred_check
      _
    $region11: #{tpu_custom_call.1} parent=1 // pred_check_branch
      %33 = sbr.rel (0) target = $region13
    $region12: #{tpu_custom_call.1} parent=1 // pred_region
      %34 = dma.done [#allocation3], 512
    $region13: #{tpu_custom_call.1} parent=1 // pred_fallthru
      _
    // Predicated region
    $region14: #{tpu_custom_call.1} parent=1 // pred_check
      _
    $region15: #{tpu_custom_call.1} parent=1 // pred_check_branch
      %36 = sbr.rel (0) target = $region17
    $region16: #{tpu_custom_call.1} parent=1 // pred_region
      %37 = dma.done [#allocation6], 128
    $region17: #{tpu_custom_call.1} parent=1 // pred_fallthru
      _
    %v38 = vld [vmem:[#allocation5] sm:$0xff]
    %v39 = vld [vmem:[#allocation2] sm:$0xff]
    %v40 = vld [vmem:[#allocation2 + $0x8] sm:$0xff]
    %v41 = vld [vmem:[#allocation2 + $0x10] sm:$0xff]
    %v42 = vld [vmem:[#allocation2 + $0x18] sm:$0xff]
    %vm43 = vcmask 261120
    %v45 = vsel %vm43, %v38, 0
    %47 = vmatprep.subr.mxu0 0.0
    %48 = vmatpush1.msra.mxu0 %v39
    %49 = vmatprep.subr.mxu0 0.0
    %50 = vmatpush1.msra.mxu0 %v40
    %51 = vmatprep.subr.mxu0 0.0
    %52 = vmatpush1.msra.mxu0 %v41
    %53 = vmatprep.subr.mxu0 0.0
    %54 = vmatpush1.msra.mxu0 %v42
    %55 = vmatprep.subr.mxu0 0.0
    %56 = vmatpush1.msra.mxu0 0.0
    %57 = vmatprep.subr.mxu0 0.0
    %58 = vmatpush1.msra.mxu0 0.0
    %59 = vmatprep.subr.mxu0 0.0
    %60 = vmatpush1.msra.mxu0 0.0
    %61 = vmatprep.subr.mxu0 0.0
    %62 = vmatpush1.msra.mxu0 0.0
    %63 = vmatprep.subr.mxu0 0.0
    %64 = vmatpush1.msra.mxu0 0.0
    %65 = vmatprep.subr.mxu0 0.0
    %66 = vmatpush1.msra.mxu0 0.0
    %67 = vmatprep.subr.mxu0 0.0
    %68 = vmatpush1.msra.mxu0 0.0
    %69 = vmatprep.subr.mxu0 0.0
    %70 = vmatpush1.msra.mxu0 0.0
    %71 = vmatprep.subr.mxu0 0.0
    %72 = vmatpush1.msra.mxu0 0.0
    %73 = vmatprep.subr.mxu0 0.0
    %74 = vmatpush1.msra.mxu0 0.0
    %75 = vmatprep.subr.mxu0 0.0
    %76 = vmatpush1.msra.mxu0 0.0
    %77 = vmatprep.subr.mxu0 0.0
    %78 = vmatpush1.msra.mxu0 0.0
    %79 = vmatprep.subr.mxu0 0.0
    %80 = vmatpush1.msra.mxu0 0.0
    %81 = vmatprep.subr.mxu0 0.0
    %82 = vmatpush1.msra.mxu0 0.0
    %83 = vmatprep.subr.mxu0 0.0
    %84 = vmatpush1.msra.mxu0 0.0
    %85 = vmatprep.subr.mxu0 0.0
    %86 = vmatpush1.msra.mxu0 0.0
    %87 = vmatprep.subr.mxu0 0.0
    %88 = vmatpush1.msra.mxu0 0.0
    %89 = vmatprep.subr.mxu0 0.0
    %90 = vmatpush1.msra.mxu0 0.0
    %91 = vmatprep.subr.mxu0 0.0
    %92 = vmatpush1.msra.mxu0 0.0
    %93 = vmatprep.subr.mxu0 0.0
    %94 = vmatpush1.msra.mxu0 0.0
    %95 = vmatprep.subr.mxu0 0.0
    %96 = vmatpush1.msra.mxu0 0.0
    %97 = vmatprep.subr.mxu0 0.0
    %98 = vmatpush1.msra.mxu0 0.0
    %99 = vmatprep.subr.mxu0 0.0
    %100 = vmatpush1.msra.mxu0 0.0
    %101 = vmatprep.subr.mxu0 0.0
    %102 = vmatpush1.msra.mxu0 0.0
    %103 = vmatprep.subr.mxu0 0.0
    %104 = vmatpush1.msra.mxu0 0.0
    %105 = vmatprep.subr.mxu0 0.0
    %106 = vmatpush1.msra.mxu0 0.0
    %107 = vmatprep.subr.mxu0 0.0
    %108 = vmatpush1.msra.mxu0 0.0
    %109 = vmatprep.subr.mxu0 0.0
    %110 = vmatpush1.msra.mxu0 0.0
    %111 = vmatprep.mubr.f32.mxu0 0.0
    %112 = vmatmul.mubr.f32.gmra.mrb[0].mxu0 %v45
    %v113 = vpop.f32.mrb[0].mxu0
    %v114 = vadd.f32 0.0, %v113
    %v115 = vpop.f32.mrb[0].mxu0
    %116 = vdwg.mxu0
    %117 = vst [vmem:[#allocation7] sm:$0xff] %v114
    // Predicated region
    $region18: #{tpu_custom_call.1} parent=1 // pred_check
      _
    $region19: #{tpu_custom_call.1} parent=1 // pred_check_branch
      %119 = sbr.rel (0) target = $region21
    $region20: #{tpu_custom_call.1} parent=1 // pred_region
      %s121 = ssub.s32 128, 128
      %122 = vsyncadd [#allocation4], %s121
      %s124 = sshll.u32 [#allocation7], 4
      %s125 = int_to_ptr.vmem [resolvable:$true] %s124
      %127 = dma.vmem_to_hbm [thread:$0]  %s125, 128, %s2, [#allocation4]
    $region21: #{tpu_custom_call.1} parent=1 // pred_fallthru
      _
    // Predicated region
    $region22: #{tpu_custom_call.1} parent=1 // pred_check
      _
    $region23: #{tpu_custom_call.1} parent=1 // pred_check_branch
      %129 = sbr.rel (0) target = $region25
    $region24: #{tpu_custom_call.1} parent=1 // pred_region
      %130 = dma.done [#allocation4], 128
    $region25: #{tpu_custom_call.1} parent=1 // pred_fallthru
      _
    %131 = vsyncpa [#allocation3], 1
    %132 = vsyncpa [#allocation6], 1
    %133 = vsyncpa [#allocation4], 1

</llo_original>
